<compile_context>
chip_gen: v5e
topology: v5e:2x2
jax: 0.10.0
libtpu: 0.0.40
codegen_flags: <defaults>
</compile_context>

<pallas_src>
import math
import functools

import jax
import jax.numpy as jnp
from jax import lax
from jax.experimental import pallas as pl
from jax.experimental.pallas import tpu as pltpu


# Finite "-inf": exp(_MASK_VALUE - m_new) underflows to exactly 0.0 in f32, so a
# fully-masked row inside a partially-masked causal tile can never produce NaN.
_MASK_VALUE = -1e30


# ---------------------------------------------------------------------------
# Kernel 1: fused qkv projection  x @ W_in^T + b_in  (head-major, q pre-scaled)
# ---------------------------------------------------------------------------
def _in_proj_kernel(x_ref, w_ref, b_ref, q_ref, k_ref, v_ref, *, n_heads, dh_pad):
    # x_ref: (1, ts, D); w_ref: (D, 3*H*dh_pad) head-major/pre-scaled; b_ref: (1, 3*H*dh_pad)
    y = jnp.dot(x_ref[0], w_ref[...], preferred_element_type=jnp.float32)
    y = (y + b_ref[...]).astype(q_ref.dtype)          # (ts, 3*H*dh_pad)
    hd = n_heads * dh_pad
    for h in range(n_heads):
        # Lane-aligned, 128-wide column copies into head-major layout (no transpose,
        # every store is an unmasked lane-dense vst).
        lo = h * dh_pad
        q_ref[0, h] = y[:, lo:lo + dh_pad]
        k_ref[0, h] = y[:, hd + lo:hd + lo + dh_pad]
        v_ref[0, h] = y[:, 2 * hd + lo:2 * hd + lo + dh_pad]


# ---------------------------------------------------------------------------
# Kernel 2: flash attention (online softmax over kv tiles) + fused out_proj
# ---------------------------------------------------------------------------
def _flash_attn_kernel(q_ref, k_ref, v_ref, w_out_ref, b_out_ref, o_ref,
                       m_ref, l_ref, acc_ref, *, causal_mask):
    qi = pl.program_id(1)
    ki = pl.program_id(2)
    n_kv = pl.num_programs(2)

    tq = q_ref.shape[2]
    tkv = k_ref.shape[2]

    @pl.when(ki == 0)
    def _init():
        # Invariant: for causal, the ki==0 tile always contains an unmasked column
        # (col 0 <= any row), so m becomes finite on the first computed tile.
        m_ref[...] = jnp.full_like(m_ref, -jnp.inf)
        l_ref[...] = jnp.zeros_like(l_ref)
        acc_ref[...] = jnp.zeros_like(acc_ref)

    def _compute():
        q = q_ref[0]          # (H, tq, dh_pad), q columns already pre-scaled
        k = k_ref[0]          # (H, tkv, dh_pad)
        v = v_ref[0]          # (H, tkv, dh_pad)

        # One batched MXU matmul across all heads (no per-head loop).
        s = jnp.einsum('hqd,hkd->hqk', q, k,
                       preferred_element_type=jnp.float32)       # (H, tq, tkv) f32
        if causal_mask:
            rows = qi * tq + lax.broadcasted_iota(jnp.int32, (tq, tkv), 0)
            cols = ki * tkv + lax.broadcasted_iota(jnp.int32, (tq, tkv), 1)
            bias = jnp.where(cols > rows, _MASK_VALUE, 0.0).astype(jnp.float32)
            s = s + bias[None, :, :]                              # shared across heads

        m_prev = m_ref[...]                                       # (H, tq, 1)
        l_prev = l_ref[...]
        m_new = jnp.maximum(m_prev, jnp.max(s, axis=-1, keepdims=True))
        alpha = jnp.exp(m_prev - m_new)
        p = jnp.exp(s - m_new)                                    # (H, tq, tkv) f32
        l_ref[...] = alpha * l_prev + jnp.sum(p, axis=-1, keepdims=True)
        pv = jnp.einsum('hqk,hkd->hqd', p.astype(v.dtype), v,
                        preferred_element_type=jnp.float32)       # (H, tq, dh_pad) f32
        acc_ref[...] = alpha * acc_ref[...] + pv
        m_ref[...] = m_new

    if causal_mask:
        # Skip kv tiles lying entirely above the diagonal for this q tile
        # (their K/V DMA is also skipped via the clamped index_map in the wrapper).
        pl.when(ki * tkv <= qi * tq + (tq - 1))(_compute)
    else:
        _compute()

    @pl.when(ki == n_kv - 1)
    def _finalize():
        # Exact reciprocal on the tiny (H,tq,1) denominator; applied as a single
        # value-level broadcast (no per-head masked scratch rewrites).
        inv_l = 1.0 / l_ref[...]
        attn = (acc_ref[...] * inv_l).astype(w_out_ref.dtype)     # (H, tq, dh_pad)
        # Fused out_proj: batched per-head (tq,dh_pad)@(dh_pad,D), then sum over H.
        # Padded dh rows of w_out are zero, so padding drops out exactly.
        partial = jnp.einsum('hqd,hde->hqe', attn, w_out_ref[...],
                             preferred_element_type=jnp.float32)  # (H, tq, D) f32
        out = jnp.sum(partial, axis=0) + b_out_ref[...]
        o_ref[0] = out.astype(o_ref.dtype)


# ---------------------------------------------------------------------------
# Wrapper
# ---------------------------------------------------------------------------
def self_attention(x, w_in, b_in, w_out, b_out, *, n_heads, causal_mask=False,
                   q_tile=128, kv_tile=128, proj_tile=128, vmem_limit_bytes=None):
    """x: (B, S, D). Weights in PyTorch nn.Linear layout: w_in (3D, D), w_out (D, D).

    Per-generation tuning knobs (see module docstring): v6e/v7x -> q_tile=kv_tile=256,
    v5e -> kv_tile=128 and q_tile/proj_tile=256-512; set vmem_limit_bytes on v7x.
    """
    B, S, D = x.shape
    assert D % n_heads == 0, "d_embed must be divisible by n_heads"
    d_head = D // n_heads
    dh_pad = ((d_head + 127) // 128) * 128        # lane-align every head (exact zero-pad)
    dtype = x.dtype

    ts = min(proj_tile, S)
    tq = min(q_tile, S)
    tkv = min(kv_tile, S)
    assert S % ts == 0 and S % tq == 0 and S % tkv == 0, \
        "sequence length must be divisible by the tile sizes"

    scale = 1.0 / math.sqrt(d_head)
    H, DH = n_heads, dh_pad

    # ---- pre-transform weights once: transpose, head-major column order, pad ----
    w_t = jnp.asarray(w_in, jnp.float32).T                        # (D, 3D)
    b_f = jnp.asarray(b_in, jnp.float32)

    def _pad_cols(m):   # (D, D) -> (D, H*DH), head-major padded columns
        m = m.reshape(D, H, d_head)
        m = jnp.pad(m, ((0, 0), (0, 0), (0, DH - d_head)))
        return m.reshape(D, H * DH)

    def _pad_vec(v):    # (D,) -> (H*DH,)
        v = v.reshape(H, d_head)
        v = jnp.pad(v, ((0, 0), (0, DH - d_head)))
        return v.reshape(H * DH)

    # 1/sqrt(d_head) folded into the q columns (free in-kernel).
    w_in_hm = jnp.concatenate(
        [_pad_cols(w_t[:, :D]) * scale,
         _pad_cols(w_t[:, D:2 * D]),
         _pad_cols(w_t[:, 2 * D:])], axis=1).astype(dtype)        # (D, 3*H*DH)
    b_in_hm = jnp.concatenate(
        [_pad_vec(b_f[:D]) * scale,
         _pad_vec(b_f[D:2 * D]),
         _pad_vec(b_f[2 * D:])]).reshape(1, 3 * H * DH).astype(dtype)

    w_out_hm = jnp.asarray(w_out, jnp.float32).T.reshape(H, d_head, D)
    w_out_hm = jnp.pad(w_out_hm, ((0, 0), (0, DH - d_head), (0, 0))).astype(dtype)
    b_out_r = jnp.asarray(b_out, dtype).reshape(1, D)

    def _cp(sem):
        kw = dict(dimension_semantics=sem)
        if vmem_limit_bytes is not None:
            kw["vmem_limit_bytes"] = vmem_limit_bytes
        return pltpu.CompilerParams(**kw)

    # ---- kernel 1: fused qkv projection, head-major outputs ---------------------
    q, k, v = pl.pallas_call(
        functools.partial(_in_proj_kernel, n_heads=H, dh_pad=DH),
        out_shape=(jax.ShapeDtypeStruct((B, H, S, DH), dtype),) * 3,
        grid_spec=pltpu.PrefetchScalarGridSpec(
            num_scalar_prefetch=0,
            grid=(B, S // ts),
            in_specs=[
                pl.BlockSpec((1, ts, D), lambda b, s: (b, s, 0)),          # x
                pl.BlockSpec((D, 3 * H * DH), lambda b, s: (0, 0)),        # W_in^T (hm, scaled)
                pl.BlockSpec((1, 3 * H * DH), lambda b, s: (0, 0)),        # b_in   (hm, scaled)
            ],
            out_specs=[
                pl.BlockSpec((1, H, ts, DH), lambda b, s: (b, 0, s, 0)),   # q
                pl.BlockSpec((1, H, ts, DH), lambda b, s: (b, 0, s, 0)),   # k
                pl.BlockSpec((1, H, ts, DH), lambda b, s: (b, 0, s, 0)),   # v
            ],
        ),
        compiler_params=_cp(("parallel", "parallel")),
    )(x, w_in_hm, b_in_hm)

    # ---- kernel 2: flash attention + fused out_proj -----------------------------
    if causal_mask:
        # Clamp the k/v block index past the diagonal so fully-masked kv tiles are
        # never re-fetched from HBM (compute for them is skipped with pl.when).
        def kv_map(b, i, j):
            diag = (i * tq + tq - 1) // tkv
            return (b, 0, jnp.minimum(j, diag), 0)
    else:
        def kv_map(b, i, j):
            return (b, 0, j, 0)

    kernel = functools.partial(_flash_attn_kernel, causal_mask=causal_mask)
    return pl.pallas_call(
        kernel,
        out_shape=jax.ShapeDtypeStruct((B, S, D), dtype),
        grid_spec=pltpu.PrefetchScalarGridSpec(
            num_scalar_prefetch=0,
            grid=(B, S // tq, S // tkv),
            in_specs=[
                pl.BlockSpec((1, H, tq, DH), lambda b, i, j: (b, 0, i, 0)),   # q tile
                pl.BlockSpec((1, H, tkv, DH), kv_map),                        # k tile
                pl.BlockSpec((1, H, tkv, DH), kv_map),                        # v tile
                # TODO(synk): pipeline_mode=pl.Buffered(1) on these constant blocks for v7x.
                pl.BlockSpec((H, DH, D), lambda b, i, j: (0, 0, 0)),          # W_out^T (hm)
                pl.BlockSpec((1, D), lambda b, i, j: (0, 0)),                 # b_out
            ],
            out_specs=pl.BlockSpec((1, tq, D), lambda b, i, j: (b, i, 0)),
            scratch_shapes=[
                pltpu.VMEM((H, tq, 1), jnp.float32),    # running max m
                pltpu.VMEM((H, tq, 1), jnp.float32),    # running sum l
                pltpu.VMEM((H, tq, DH), jnp.float32),   # f32 PV accumulator
            ],
        ),
        compiler_params=_cp(("parallel", "parallel", "arbitrary")),
    )(q, k, v, w_out_hm, b_out_r)


# ---------------------------------------------------------------------------
# Pure-JAX reference mirroring the PyTorch forward (f32 math).
# ---------------------------------------------------------------------------
def self_attention_ref(x, w_in, b_in, w_out, b_out, *, n_heads, causal_mask=False):
    B, S, D = x.shape
    d_head = D // n_heads
    x = x.astype(jnp.float32)
    w_in = w_in.astype(jnp.float32)
    b_in = b_in.astype(jnp.float32)
    w_out = w_out.astype(jnp.float32)
    b_out = b_out.astype(jnp.float32)
    qkv = x @ w_in.T + b_in
    q, k, v = jnp.split(qkv, 3, axis=-1)
    q = q.reshape(B, S, n_heads, d_head).transpose(0, 2, 1, 3)
    k = k.reshape(B, S, n_heads, d_head).transpose(0, 2, 1, 3)
    v = v.reshape(B, S, n_heads, d_head).transpose(0, 2, 1, 3)
    weight = jnp.einsum('bhqd,bhkd->bhqk', q, k)
    if causal_mask:
        mask = jnp.triu(jnp.ones((S, S), dtype=bool), k=1)
        weight = jnp.where(mask, -jnp.inf, weight)
    weight = weight / math.sqrt(d_head)
    weight = jax.nn.softmax(weight, axis=-1)
    out = jnp.einsum('bhqk,bhkd->bhqd', weight, v)
    out = out.transpose(0, 2, 1, 3).reshape(B, S, D)
    return out @ w_out.T + b_out


if __name__ == "__main__":
    key = jax.random.PRNGKey(0)
    kx, k1, k2, k3, k4 = jax.random.split(key, 5)

    B, S, D, H = 2, 8, 32, 4
    bound = 1.0 / math.sqrt(D)
    x = jax.random.normal(kx, (B, S, D), jnp.float32)
    w_in = jax.random.uniform(k1, (3 * D, D), jnp.float32, -bound, bound)
    b_in = jax.random.uniform(k2, (3 * D,), jnp.float32, -bound, bound)
    w_out = jax.random.uniform(k3, (D, D), jnp.float32, -bound, bound)
    b_out = jax.random.uniform(k4, (D,), jnp.float32, -bound, bound)

    # 1) Small case matching the module's convention (single tile per array).
    for causal in (False, True):
        out = jax.block_until_ready(
            self_attention(x, w_in, b_in, w_out, b_out, n_heads=H,
                           causal_mask=causal))
        ref = self_attention_ref(x, w_in, b_in, w_out, b_out, n_heads=H,
                                 causal_mask=causal)
        assert out.shape == (B, S, D)
        err = float(jnp.max(jnp.abs(out - ref)))
        assert jnp.allclose(out, ref, atol=5e-3, rtol=5e-3), \
            f"f32 mismatch (causal={causal}), max err {err}"

    # 2) Longer sequence: multi-tile flash loop, tq > tkv partial masking,
    #    causal compute-skip + clamped (no-refetch) k/v index_map.
    S2 = 256
    x2 = jax.random.normal(kx, (B, S2, D), jnp.float32)
    for causal in (False, True):
        out = jax.block_until_ready(
            self_attention(x2, w_in, b_in, w_out, b_out, n_heads=H,
                           causal_mask=causal, q_tile=128, kv_tile=64))
        ref = self_attention_ref(x2, w_in, b_in, w_out, b_out, n_heads=H,
                                 causal_mask=causal)
        err = float(jnp.max(jnp.abs(out - ref)))
        assert jnp.allclose(out, ref, atol=5e-3, rtol=5e-3), \
            f"f32 tiled mismatch (causal={causal}), max err {err}"

    # 3) bf16 MXU-operand path (f32 accumulation) vs f32 reference on the
    #    bf16-rounded parameters.
    xb = x2.astype(jnp.bfloat16)
    wib, bib = w_in.astype(jnp.bfloat16), b_in.astype(jnp.bfloat16)
    wob, bob = w_out.astype(jnp.bfloat16), b_out.astype(jnp.bfloat16)
    out = jax.block_until_ready(
        self_attention(xb, wib, bib, wob, bob, n_heads=H, causal_mask=True,
                       q_tile=128, kv_tile=128))
    ref = self_attention_ref(xb, wib, bib, wob, bob, n_heads=H, causal_mask=True)
    err = float(jnp.max(jnp.abs(out.astype(jnp.float32) - ref)))
    assert jnp.allclose(out.astype(jnp.float32), ref, atol=5e-2, rtol=5e-2), \
        f"bf16 mismatch, max err {err}"

    print("KERNEL_OK")
</pallas_src>

<mosaic_0001>
module attributes {stable_mosaic.version = 11 : i64} {
  func.func @_in_proj_kernel(%arg0: i32, %arg1: i32, %arg2: memref<1x8x32xf32, #tpu.memory_space<vmem>>, %arg3: memref<32x1536xf32, #tpu.memory_space<vmem>>, %arg4: memref<1x1536xf32, #tpu.memory_space<vmem>>, %arg5: memref<1x4x8x128xf32, #tpu.memory_space<vmem>>, %arg6: memref<1x4x8x128xf32, #tpu.memory_space<vmem>>, %arg7: memref<1x4x8x128xf32, #tpu.memory_space<vmem>>) attributes {dimension_semantics = [#tpu.dimension_semantics<parallel>, #tpu.dimension_semantics<parallel>], iteration_bounds = array<i64: 2, 1>, scalar_prefetch = 0 : i64, scratch_operands = 0 : i64, tpu.core_type = #tpu.core_type<tc>, window_params = [{transform_indices = @transform_0, window_bounds = array<i64: 1, 8, 32>}, {pipeline_mode = #tpu.pipeline_mode<synchronous>, transform_indices = @transform_1, window_bounds = array<i64: 32, 1536>}, {pipeline_mode = #tpu.pipeline_mode<synchronous>, transform_indices = @transform_2, window_bounds = array<i64: 1, 1536>}, {transform_indices = @transform_3, window_bounds = array<i64: 1, 4, 8, 128>}, {transform_indices = @transform_4, window_bounds = array<i64: 1, 4, 8, 128>}, {transform_indices = @transform_5, window_bounds = array<i64: 1, 4, 8, 128>}]} {
    %c0 = arith.constant 0 : index
    %c0_0 = arith.constant 0 : index
    %c0_1 = arith.constant 0 : index
    %0 = vector.load %arg2[%c0, %c0_0, %c0_1] : memref<1x8x32xf32, #tpu.memory_space<vmem>>, vector<1x8x32xf32>
    %1 = vector.shape_cast %0 : vector<1x8x32xf32> to vector<8x32xf32>
    %c0_2 = arith.constant 0 : index
    %c0_3 = arith.constant 0 : index
    %2 = vector.load %arg3[%c0_2, %c0_3] : memref<32x1536xf32, #tpu.memory_space<vmem>>, vector<32x1536xf32>
    %cst = arith.constant dense<0.000000e+00> : vector<8x1536xf32>
    %3 = tpu.matmul %1, %2, %cst {dimension_numbers = #tpu.dot_dimension_numbers<[1], [0], [0], [1], [0, 0, 1, 1], [], []>} : vector<8x32xf32>, vector<32x1536xf32>, vector<8x1536xf32> -> vector<8x1536xf32>
    %c0_4 = arith.constant 0 : index
    %c0_5 = arith.constant 0 : index
    %4 = vector.load %arg4[%c0_4, %c0_5] : memref<1x1536xf32, #tpu.memory_space<vmem>>, vector<1x1536xf32>
    %5 = vector.broadcast %4 : vector<1x1536xf32> to vector<8x1536xf32>
    %6 = arith.addf %3, %5 : vector<8x1536xf32>
    %7 = vector.extract_strided_slice %6 {offsets = [0, 0], sizes = [8, 128], strides = [1, 1]} : vector<8x1536xf32> to vector<8x128xf32>
    %c0_6 = arith.constant 0 : index
    %c0_7 = arith.constant 0 : index
    %c0_8 = arith.constant 0 : index
    %c0_9 = arith.constant 0 : index
    %8 = vector.load %arg5[%c0_6, %c0_7, %c0_8, %c0_9] : memref<1x4x8x128xf32, #tpu.memory_space<vmem>>, vector<1x1x8x128xf32>
    %9 = vector.shape_cast %8 : vector<1x1x8x128xf32> to vector<8x128xf32>
    %10 = vector.shape_cast %7 : vector<8x128xf32> to vector<1x1x8x128xf32>
    tpu.vector_store %arg5[%c0_6, %c0_7, %c0_8, %c0_9], %10 {strides = array<i32>} : memref<1x4x8x128xf32, #tpu.memory_space<vmem>>, vector<1x1x8x128xf32>,
    %11 = vector.extract_strided_slice %6 {offsets = [0, 512], sizes = [8, 128], strides = [1, 1]} : vector<8x1536xf32> to vector<8x128xf32>
    %c0_10 = arith.constant 0 : index
    %c0_11 = arith.constant 0 : index
    %c0_12 = arith.constant 0 : index
    %c0_13 = arith.constant 0 : index
    %12 = vector.load %arg6[%c0_10, %c0_11, %c0_12, %c0_13] : memref<1x4x8x128xf32, #tpu.memory_space<vmem>>, vector<1x1x8x128xf32>
    %13 = vector.shape_cast %12 : vector<1x1x8x128xf32> to vector<8x128xf32>
    %14 = vector.shape_cast %11 : vector<8x128xf32> to vector<1x1x8x128xf32>
    tpu.vector_store %arg6[%c0_10, %c0_11, %c0_12, %c0_13], %14 {strides = array<i32>} : memref<1x4x8x128xf32, #tpu.memory_space<vmem>>, vector<1x1x8x128xf32>,
    %15 = vector.extract_strided_slice %6 {offsets = [0, 1024], sizes = [8, 128], strides = [1, 1]} : vector<8x1536xf32> to vector<8x128xf32>
    %c0_14 = arith.constant 0 : index
    %c0_15 = arith.constant 0 : index
    %c0_16 = arith.constant 0 : index
    %c0_17 = arith.constant 0 : index
    %16 = vector.load %arg7[%c0_14, %c0_15, %c0_16, %c0_17] : memref<1x4x8x128xf32, #tpu.memory_space<vmem>>, vector<1x1x8x128xf32>
    %17 = vector.shape_cast %16 : vector<1x1x8x128xf32> to vector<8x128xf32>
    %18 = vector.shape_cast %15 : vector<8x128xf32> to vector<1x1x8x128xf32>
    tpu.vector_store %arg7[%c0_14, %c0_15, %c0_16, %c0_17], %18 {strides = array<i32>} : memref<1x4x8x128xf32, #tpu.memory_space<vmem>>, vector<1x1x8x128xf32>,
    %19 = vector.extract_strided_slice %6 {offsets = [0, 128], sizes = [8, 128], strides = [1, 1]} : vector<8x1536xf32> to vector<8x128xf32>
    %c0_18 = arith.constant 0 : index
    %c1 = arith.constant 1 : index
    %c0_19 = arith.constant 0 : index
    %c0_20 = arith.constant 0 : index
    %20 = vector.load %arg5[%c0_18, %c1, %c0_19, %c0_20] : memref<1x4x8x128xf32, #tpu.memory_space<vmem>>, vector<1x1x8x128xf32>
    %21 = vector.shape_cast %20 : vector<1x1x8x128xf32> to vector<8x128xf32>
    %22 = vector.shape_cast %19 : vector<8x128xf32> to vector<1x1x8x128xf32>
    tpu.vector_store %arg5[%c0_18, %c1, %c0_19, %c0_20], %22 {strides = array<i32>} : memref<1x4x8x128xf32, #tpu.memory_space<vmem>>, vector<1x1x8x128xf32>,
    %23 = vector.extract_strided_slice %6 {offsets = [0, 640], sizes = [8, 128], strides = [1, 1]} : vector<8x1536xf32> to vector<8x128xf32>
    %c0_21 = arith.constant 0 : index
    %c1_22 = arith.constant 1 : index
    %c0_23 = arith.constant 0 : index
    %c0_24 = arith.constant 0 : index
    %24 = vector.load %arg6[%c0_21, %c1_22, %c0_23, %c0_24] : memref<1x4x8x128xf32, #tpu.memory_space<vmem>>, vector<1x1x8x128xf32>
    %25 = vector.shape_cast %24 : vector<1x1x8x128xf32> to vector<8x128xf32>
    %26 = vector.shape_cast %23 : vector<8x128xf32> to vector<1x1x8x128xf32>
    tpu.vector_store %arg6[%c0_21, %c1_22, %c0_23, %c0_24], %26 {strides = array<i32>} : memref<1x4x8x128xf32, #tpu.memory_space<vmem>>, vector<1x1x8x128xf32>,
    %27 = vector.extract_strided_slice %6 {offsets = [0, 1152], sizes = [8, 128], strides = [1, 1]} : vector<8x1536xf32> to vector<8x128xf32>
    %c0_25 = arith.constant 0 : index
    %c1_26 = arith.constant 1 : index
    %c0_27 = arith.constant 0 : index
    %c0_28 = arith.constant 0 : index
    %28 = vector.load %arg7[%c0_25, %c1_26, %c0_27, %c0_28] : memref<1x4x8x128xf32, #tpu.memory_space<vmem>>, vector<1x1x8x128xf32>
    %29 = vector.shape_cast %28 : vector<1x1x8x128xf32> to vector<8x128xf32>
    %30 = vector.shape_cast %27 : vector<8x128xf32> to vector<1x1x8x128xf32>
    tpu.vector_store %arg7[%c0_25, %c1_26, %c0_27, %c0_28], %30 {strides = array<i32>} : memref<1x4x8x128xf32, #tpu.memory_space<vmem>>, vector<1x1x8x128xf32>,
    %31 = vector.extract_strided_slice %6 {offsets = [0, 256], sizes = [8, 128], strides = [1, 1]} : vector<8x1536xf32> to vector<8x128xf32>
    %c0_29 = arith.constant 0 : index
    %c2 = arith.constant 2 : index
    %c0_30 = arith.constant 0 : index
    %c0_31 = arith.constant 0 : index
    %32 = vector.load %arg5[%c0_29, %c2, %c0_30, %c0_31] : memref<1x4x8x128xf32, #tpu.memory_space<vmem>>, vector<1x1x8x128xf32>
    %33 = vector.shape_cast %32 : vector<1x1x8x128xf32> to vector<8x128xf32>
    %34 = vector.shape_cast %31 : vector<8x128xf32> to vector<1x1x8x128xf32>
    tpu.vector_store %arg5[%c0_29, %c2, %c0_30, %c0_31], %34 {strides = array<i32>} : memref<1x4x8x128xf32, #tpu.memory_space<vmem>>, vector<1x1x8x128xf32>,
    %35 = vector.extract_strided_slice %6 {offsets = [0, 768], sizes = [8, 128], strides = [1, 1]} : vector<8x1536xf32> to vector<8x128xf32>
    %c0_32 = arith.constant 0 : index
    %c2_33 = arith.constant 2 : index
    %c0_34 = arith.constant 0 : index
    %c0_35 = arith.constant 0 : index
    %36 = vector.load %arg6[%c0_32, %c2_33, %c0_34, %c0_35] : memref<1x4x8x128xf32, #tpu.memory_space<vmem>>, vector<1x1x8x128xf32>
    %37 = vector.shape_cast %36 : vector<1x1x8x128xf32> to vector<8x128xf32>
    %38 = vector.shape_cast %35 : vector<8x128xf32> to vector<1x1x8x128xf32>
    tpu.vector_store %arg6[%c0_32, %c2_33, %c0_34, %c0_35], %38 {strides = array<i32>} : memref<1x4x8x128xf32, #tpu.memory_space<vmem>>, vector<1x1x8x128xf32>,
    %39 = vector.extract_strided_slice %6 {offsets = [0, 1280], sizes = [8, 128], strides = [1, 1]} : vector<8x1536xf32> to vector<8x128xf32>
    %c0_36 = arith.constant 0 : index
    %c2_37 = arith.constant 2 : index
    %c0_38 = arith.constant 0 : index
    %c0_39 = arith.constant 0 : index
    %40 = vector.load %arg7[%c0_36, %c2_37, %c0_38, %c0_39] : memref<1x4x8x128xf32, #tpu.memory_space<vmem>>, vector<1x1x8x128xf32>
    %41 = vector.shape_cast %40 : vector<1x1x8x128xf32> to vector<8x128xf32>
    %42 = vector.shape_cast %39 : vector<8x128xf32> to vector<1x1x8x128xf32>
    tpu.vector_store %arg7[%c0_36, %c2_37, %c0_38, %c0_39], %42 {strides = array<i32>} : memref<1x4x8x128xf32, #tpu.memory_space<vmem>>, vector<1x1x8x128xf32>,
    %43 = vector.extract_strided_slice %6 {offsets = [0, 384], sizes = [8, 128], strides = [1, 1]} : vector<8x1536xf32> to vector<8x128xf32>
    %c0_40 = arith.constant 0 : index
    %c3 = arith.constant 3 : index
    %c0_41 = arith.constant 0 : index
    %c0_42 = arith.constant 0 : index
    %44 = vector.load %arg5[%c0_40, %c3, %c0_41, %c0_42] : memref<1x4x8x128xf32, #tpu.memory_space<vmem>>, vector<1x1x8x128xf32>
    %45 = vector.shape_cast %44 : vector<1x1x8x128xf32> to vector<8x128xf32>
    %46 = vector.shape_cast %43 : vector<8x128xf32> to vector<1x1x8x128xf32>
    tpu.vector_store %arg5[%c0_40, %c3, %c0_41, %c0_42], %46 {strides = array<i32>} : memref<1x4x8x128xf32, #tpu.memory_space<vmem>>, vector<1x1x8x128xf32>,
    %47 = vector.extract_strided_slice %6 {offsets = [0, 896], sizes = [8, 128], strides = [1, 1]} : vector<8x1536xf32> to vector<8x128xf32>
    %c0_43 = arith.constant 0 : index
    %c3_44 = arith.constant 3 : index
    %c0_45 = arith.constant 0 : index
    %c0_46 = arith.constant 0 : index
    %48 = vector.load %arg6[%c0_43, %c3_44, %c0_45, %c0_46] : memref<1x4x8x128xf32, #tpu.memory_space<vmem>>, vector<1x1x8x128xf32>
    %49 = vector.shape_cast %48 : vector<1x1x8x128xf32> to vector<8x128xf32>
    %50 = vector.shape_cast %47 : vector<8x128xf32> to vector<1x1x8x128xf32>
    tpu.vector_store %arg6[%c0_43, %c3_44, %c0_45, %c0_46], %50 {strides = array<i32>} : memref<1x4x8x128xf32, #tpu.memory_space<vmem>>, vector<1x1x8x128xf32>,
    %51 = vector.extract_strided_slice %6 {offsets = [0, 1408], sizes = [8, 128], strides = [1, 1]} : vector<8x1536xf32> to vector<8x128xf32>
    %c0_47 = arith.constant 0 : index
    %c3_48 = arith.constant 3 : index
    %c0_49 = arith.constant 0 : index
    %c0_50 = arith.constant 0 : index
    %52 = vector.load %arg7[%c0_47, %c3_48, %c0_49, %c0_50] : memref<1x4x8x128xf32, #tpu.memory_space<vmem>>, vector<1x1x8x128xf32>
    %53 = vector.shape_cast %52 : vector<1x1x8x128xf32> to vector<8x128xf32>
    %54 = vector.shape_cast %51 : vector<8x128xf32> to vector<1x1x8x128xf32>
    tpu.vector_store %arg7[%c0_47, %c3_48, %c0_49, %c0_50], %54 {strides = array<i32>} : memref<1x4x8x128xf32, #tpu.memory_space<vmem>>, vector<1x1x8x128xf32>,
    return
  }
  func.func @transform_0(%arg0: i32, %arg1: i32) -> (i32, i32, i32) {
    %c0_i32 = arith.constant 0 : i32
    %c0_i32_0 = arith.constant 0 : i32
    return %arg0, %arg1, %c0_i32 : i32, i32, i32
  }
  func.func @transform_1(%arg0: i32, %arg1: i32) -> (i32, i32) {
    %c0_i32 = arith.constant 0 : i32
    %c0_i32_0 = arith.constant 0 : i32
    %c0_i32_1 = arith.constant 0 : i32
    return %c0_i32, %c0_i32_0 : i32, i32
  }
  func.func @transform_2(%arg0: i32, %arg1: i32) -> (i32, i32) {
    %c0_i32 = arith.constant 0 : i32
    %c0_i32_0 = arith.constant 0 : i32
    %c0_i32_1 = arith.constant 0 : i32
    return %c0_i32, %c0_i32_0 : i32, i32
  }
  func.func @transform_3(%arg0: i32, %arg1: i32) -> (i32, i32, i32, i32) {
    %c0_i32 = arith.constant 0 : i32
    %c0_i32_0 = arith.constant 0 : i32
    %c0_i32_1 = arith.constant 0 : i32
    return %arg0, %c0_i32, %arg1, %c0_i32_0 : i32, i32, i32, i32
  }
  func.func @transform_4(%arg0: i32, %arg1: i32) -> (i32, i32, i32, i32) {
    %c0_i32 = arith.constant 0 : i32
    %c0_i32_0 = arith.constant 0 : i32
    %c0_i32_1 = arith.constant 0 : i32
    return %arg0, %c0_i32, %arg1, %c0_i32_0 : i32, i32, i32, i32
  }
  func.func @transform_5(%arg0: i32, %arg1: i32) -> (i32, i32, i32, i32) {
    %c0_i32 = arith.constant 0 : i32
    %c0_i32_0 = arith.constant 0 : i32
    %c0_i32_1 = arith.constant 0 : i32
    return %arg0, %c0_i32, %arg1, %c0_i32_0 : i32, i32, i32, i32
  }
}

</mosaic_0001>

<llo_original>
// kernel: tpu_custom_call.1
$region0: #{tpu_custom_call.1}
  #allocation0 [shape = 'u32[]', space=smem, size = 0x4, offset = 0x4, fixed_abs, tag = 'smem constant byte address 0x4 - core index']
  #allocation1 [shape = 'u32[72,128]{1,0:T(1,128)}', space=vmem, size = 0x9000, scoped, tag = 'internal scratch']
  %s0 = inlined_call_operand.hbm [shape: f32[2,8,32], index: 0, kind: input, shape index: {}]
  %s1 = inlined_call_operand.hbm [shape: f32[32,1536], index: 1, kind: input, shape index: {}]
  %s2 = inlined_call_operand.hbm [shape: f32[1,1536], index: 2, kind: input, shape index: {}]
  %s3 = inlined_call_operand.hbm [shape: f32[2,4,8,128], index: 3, kind: output, shape index: {0}]
  %s4 = inlined_call_operand.hbm [shape: f32[2,4,8,128], index: 4, kind: output, shape index: {1}]
  %s5 = inlined_call_operand.hbm [shape: f32[2,4,8,128], index: 5, kind: output, shape index: {2}]
  %6 = xla_tuple %s3, %s4, %s5
  %s7 = sld [smem:[#allocation0]]
  $region73: #{tpu_custom_call.1} parent=0
    _
  %s9 = ssub.s32 1, %s7
  %s10 = scalar_select 0, %s9, %s7
  $region1: #{tpu_custom_call.1} parent=0
    #allocation2 [shape = 'u8[8192]{0}', space=vmem, size = 0x2000, scoped, tag = 'input window, operand 0']
    #allocation3 [shape = 's32[2]{0}', space=sflag, size = 0x8, scoped, tag = 'scoped memory for tpu_custom_call.1']
    #allocation4 [shape = 's32[2]{0}', space=sflag, size = 0x8, scoped, tag = 'scoped memory for tpu_custom_call.1']
    #allocation5 [shape = 'u8[196608]{0}', space=vmem, size = 0x30000, scoped, tag = 'input window, operand 1, single buffered']
    #allocation6 [shape = 's32[1]{0}', space=sflag, size = 0x4, scoped, tag = 'scoped memory for tpu_custom_call.1']
    #allocation7 [shape = 'u8[6144]{0}', space=vmem, size = 0x1800, scoped, tag = 'input window, operand 2, single buffered']
    #allocation8 [shape = 'u8[32768]{0}', space=vmem, size = 0x8000, scoped, tag = 'output window, operand 0']
    #allocation9 [shape = 'u8[32768]{0}', space=vmem, size = 0x8000, scoped, tag = 'output window, operand 1']
    #allocation10 [shape = 's32[2]{0}', space=sflag, size = 0x8, scoped, tag = 'scoped memory for tpu_custom_call.1']
    #allocation11 [shape = 'u8[32768]{0}', space=vmem, size = 0x8000, scoped, tag = 'output window, operand 2']
    %11 = vsyncpa [#allocation3], 0
    %s12 = scalar_lea.sflag [#allocation3], 1
    %13 = vsyncpa %s12, 0
    %14 = vsyncpa [#allocation6], 0
    %15 = vsyncpa [#allocation4], 0
    %s16 = scalar_lea.sflag [#allocation4], 1
    %17 = vsyncpa %s16, 0
    %18 = vsyncpa [#allocation10], 0
    %s19 = scalar_lea.sflag [#allocation10], 1
    %20 = vsyncpa %s19, 0
    loop: start=0, step=1, limit=4
    $region2: #{tpu_custom_call.1} parent=1 // loop_pre_header
      _
    $region3: #{tpu_custom_call.1} parent=1 // loop_header
      %s22 = sphi 0, %s26
      %p23 = scmp.ge.s32.totalorder %s22, 4
      %s29 = sphi 0, %s41
      %s30 = sphi 0, %s37
      %s31 = sphi 0, %s29
      %s32 = sphi 0, %s30
      %s33 = sphi 0, %s31
      %s34 = sphi 0, %s32
      %s46 = sphi 0, %s48
      %s49 = sphi 0, %s46
      %s50 = sphi 0, %s49
      %s66 = sphi 0, %s50
      %s70 = sphi 0, %s70
      %s72 = sphi 0, %s70
      %s73 = sphi 0, %s72
      %s87 = sphi 0, %s73
      %s91 = sphi 0, %s91
      %s93 = sphi 0, %s91
      %s94 = sphi 0, %s93
      %s108 = sphi 0, %s94
      %s116 = sphi 0, %s118
      %s119 = sphi 0, %s116
      %s120 = sphi 0, %s119
      %s136 = sphi 0, %s120
      %s144 = sphi 0, %s146
      %s147 = sphi 0, %s144
      %s148 = sphi 0, %s147
      %s164 = sphi 0, %s148
      %s172 = sphi 0, %s174
      %s175 = sphi 0, %s172
      %s176 = sphi 0, %s175
      %s192 = sphi 0, %s176
    $region4: #{tpu_custom_call.1} parent=1 // loop_header_branch
      %25 = sbr.rel (%p23) target = $region8
    $region5: #{tpu_custom_call.1} parent=1 // loop_body
      %s27 = ssub.s32 %s22, 1
      %s28 = ssub.s32 %s22, 2
      %s35 = sadd.s32 1, %s30
      %p36 = scmp.ge.s32.totalorder %s35, 1
      %s37 = scalar_select %p36, 0, %s35
      %s38 = sadd.s32 1, %s29
      %s39 = scalar_select %p36, %s38, %s29
      %p40 = scmp.ge.s32.totalorder %s39, 2
      %s41 = scalar_select %p40, 0, %s39
      %s42 = ssub.s32 %s29, %s41
      %s43 = ssub.s32 %s30, %s37
      %s44 = sor.u32 %s42, %s43
      %p45 = scmp.eq.s32.totalorder %s44, 0
      %s47 = sadd.s32 %s46, 1
      %s48 = scalar_select %p45, %s46, %s47
      %p51 = pneg %p45
      %p52 = scmp.eq.s32.totalorder %s22, 1
      %p53 = por %p51, %p52
      %p54 = scmp.ne.s32.totalorder %s46, %s49
      %p55 = scmp.eq.s32.totalorder %s22, 0
      %p56 = por %p54, %p55
      %p57 = scmp.ne.s32.totalorder %s46, %s49
      %p58 = scmp.eq.s32.totalorder %s27, 1
      %p59 = por %p57, %p58
      %p60 = scmp.ne.s32.totalorder %s49, %s50
      %p61 = scmp.eq.s32.totalorder %s27, 0
      %p62 = por %p60, %p61
      %p63 = scmp.ne.s32.totalorder %s49, %s50
      %p64 = scmp.eq.s32.totalorder %s28, 1
      %p65 = por %p63, %p64
      %p67 = scmp.ne.s32.totalorder %s50, %s66
      %p68 = scmp.eq.s32.totalorder %s28, 0
      %p69 = por %p67, %p68
      %s71 = sadd.s32 %s70, 1
      %p74 = scmp.eq.s32.totalorder %s22, 1
      %p75 = scmp.ne.s32.totalorder %s70, %s72
      %p76 = scmp.eq.s32.totalorder %s22, 0
      %p77 = por %p75, %p76
      %p78 = scmp.ne.s32.totalorder %s70, %s72
      %p79 = scmp.eq.s32.totalorder %s27, 1
      %p80 = por %p78, %p79
      %p81 = scmp.ne.s32.totalorder %s72, %s73
      %p82 = scmp.eq.s32.totalorder %s27, 0
      %p83 = por %p81, %p82
      %p84 = scmp.ne.s32.totalorder %s72, %s73
      %p85 = scmp.eq.s32.totalorder %s28, 1
      %p86 = por %p84, %p85
      %p88 = scmp.ne.s32.totalorder %s73, %s87
      %p89 = scmp.eq.s32.totalorder %s28, 0
      %p90 = por %p88, %p89
      %s92 = sadd.s32 %s91, 1
      %p95 = scmp.eq.s32.totalorder %s22, 1
      %p96 = scmp.ne.s32.totalorder %s91, %s93
      %p97 = scmp.eq.s32.totalorder %s22, 0
      %p98 = por %p96, %p97
      %p99 = scmp.ne.s32.totalorder %s91, %s93
      %p100 = scmp.eq.s32.totalorder %s27, 1
      %p101 = por %p99, %p100
      %p102 = scmp.ne.s32.totalorder %s93, %s94
      %p103 = scmp.eq.s32.totalorder %s27, 0
      %p104 = por %p102, %p103
      %p105 = scmp.ne.s32.totalorder %s93, %s94
      %p106 = scmp.eq.s32.totalorder %s28, 1
      %p107 = por %p105, %p106
      %p109 = scmp.ne.s32.totalorder %s94, %s108
      %p110 = scmp.eq.s32.totalorder %s28, 0
      %p111 = por %p109, %p110
      %s112 = ssub.s32 %s29, %s41
      %s113 = ssub.s32 %s30, %s37
      %s114 = sor.u32 %s112, %s113
      %p115 = scmp.eq.s32.totalorder %s114, 0
      %s117 = sadd.s32 %s116, 1
      %s118 = scalar_select %p115, %s116, %s117
      %p121 = pneg %p115
      %p122 = scmp.eq.s32.totalorder %s22, 1
      %p123 = por %p121, %p122
      %p124 = scmp.ne.s32.totalorder %s116, %s119
      %p125 = scmp.eq.s32.totalorder %s22, 0
      %p126 = por %p124, %p125
      %p127 = scmp.ne.s32.totalorder %s116, %s119
      %p128 = scmp.eq.s32.totalorder %s27, 1
      %p129 = por %p127, %p128
      %p130 = scmp.ne.s32.totalorder %s119, %s120
      %p131 = scmp.eq.s32.totalorder %s27, 0
      %p132 = por %p130, %p131
      %p133 = scmp.ne.s32.totalorder %s119, %s120
      %p134 = scmp.eq.s32.totalorder %s28, 1
      %p135 = por %p133, %p134
      %p137 = scmp.ne.s32.totalorder %s120, %s136
      %p138 = scmp.eq.s32.totalorder %s28, 0
      %p139 = por %p137, %p138
      %s140 = ssub.s32 %s29, %s41
      %s141 = ssub.s32 %s30, %s37
      %s142 = sor.u32 %s140, %s141
      %p143 = scmp.eq.s32.totalorder %s142, 0
      %s145 = sadd.s32 %s144, 1
      %s146 = scalar_select %p143, %s144, %s145
      %p149 = pneg %p143
      %p150 = scmp.eq.s32.totalorder %s22, 1
      %p151 = por %p149, %p150
      %p152 = scmp.ne.s32.totalorder %s144, %s147
      %p153 = scmp.eq.s32.totalorder %s22, 0
      %p154 = por %p152, %p153
      %p155 = scmp.ne.s32.totalorder %s144, %s147
      %p156 = scmp.eq.s32.totalorder %s27, 1
      %p157 = por %p155, %p156
      %p158 = scmp.ne.s32.totalorder %s147, %s148
      %p159 = scmp.eq.s32.totalorder %s27, 0
      %p160 = por %p158, %p159
      %p161 = scmp.ne.s32.totalorder %s147, %s148
      %p162 = scmp.eq.s32.totalorder %s28, 1
      %p163 = por %p161, %p162
      %p165 = scmp.ne.s32.totalorder %s148, %s164
      %p166 = scmp.eq.s32.totalorder %s28, 0
      %p167 = por %p165, %p166
      %s168 = ssub.s32 %s29, %s41
      %s169 = ssub.s32 %s30, %s37
      %s170 = sor.u32 %s168, %s169
      %p171 = scmp.eq.s32.totalorder %s170, 0
      %s173 = sadd.s32 %s172, 1
      %s174 = scalar_select %p171, %s172, %s173
      %p177 = pneg %p171
      %p178 = scmp.eq.s32.totalorder %s22, 1
      %p179 = por %p177, %p178
      %p180 = scmp.ne.s32.totalorder %s172, %s175
      %p181 = scmp.eq.s32.totalorder %s22, 0
      %p182 = por %p180, %p181
      %p183 = scmp.ne.s32.totalorder %s172, %s175
      %p184 = scmp.eq.s32.totalorder %s27, 1
      %p185 = por %p183, %p184
      %p186 = scmp.ne.s32.totalorder %s175, %s176
      %p187 = scmp.eq.s32.totalorder %s27, 0
      %p188 = por %p186, %p187
      %p189 = scmp.ne.s32.totalorder %s175, %s176
      %p190 = scmp.eq.s32.totalorder %s28, 1
      %p191 = por %p189, %p190
      %p193 = scmp.ne.s32.totalorder %s176, %s192
      %p194 = scmp.eq.s32.totalorder %s28, 0
      %p195 = por %p193, %p194
      %p196 = scmp.le.s32.totalorder 1, %s22
      %p197 = scmp.lt.s32.totalorder %s22, 3
      %p198 = pnand %p196, %p197
      %p199 = pneg %p198
      // Predicated region
      $region9: #{tpu_custom_call.1} parent=5 // pred_check
        _
      $region10: #{tpu_custom_call.1} parent=5 // pred_check_branch
        %201 = sbr.rel (%p198) target = $region12
      $region11: #{tpu_custom_call.1} parent=5 // pred_region
        %s202 = ssub.s32 %s22, 1
        // Predicated region
        $region13: #{tpu_custom_call.1} parent=11 // pred_check
          %p203 = pneg %p83
        $region14: #{tpu_custom_call.1} parent=11 // pred_check_branch
          %205 = sbr.rel (%p203) target = $region16
        $region15: #{tpu_custom_call.1} parent=11 // pred_region
          %207 = vsyncadd [#allocation6], 0
          %s208 = sshll.u32 %s1, 4
          %s209 = int_to_ptr.hbm [resolvable:$true] %s208
          %s210 = sshll.u32 [#allocation5], 4
          %s211 = int_to_ptr.vmem [resolvable:$true] %s210
          %216 = dma.hbm_to_vmem [thread:$0]  %s209, 6144, %s211, [#allocation6], 1536, 1536, 96
        $region16: #{tpu_custom_call.1} parent=11 // pred_fallthru
          _
        // Predicated region
        $region17: #{tpu_custom_call.1} parent=11 // pred_check
          %p217 = pneg %p104
        $region18: #{tpu_custom_call.1} parent=11 // pred_check_branch
          %219 = sbr.rel (%p217) target = $region20
        $region19: #{tpu_custom_call.1} parent=11 // pred_region
          %221 = vsyncadd [#allocation6], 0
          %s223 = sshll.u32 %s2, 4
          %s224 = int_to_ptr.hbm [resolvable:$true] %s223
          %s225 = sshll.u32 [#allocation7], 4
          %s226 = int_to_ptr.vmem [resolvable:$true] %s225
          %228 = dma.hbm_to_vmem [thread:$0]  %s224, 192, %s226, [#allocation6]
        $region20: #{tpu_custom_call.1} parent=11 // pred_fallthru
          _
      $region12: #{tpu_custom_call.1} parent=5 // pred_fallthru
        _
      %p229 = scmp.lt.s32.totalorder %s22, 2
      // Predicated region
      $region21: #{tpu_custom_call.1} parent=5 // pred_check
        %p230 = pneg %p229
      $region22: #{tpu_custom_call.1} parent=5 // pred_check_branch
        %232 = sbr.rel (%p230) target = $region24
      $region23: #{tpu_custom_call.1} parent=5 // pred_region
        // Predicated region
        $region25: #{tpu_custom_call.1} parent=23 // pred_check
          %p233 = pneg %p56
        $region26: #{tpu_custom_call.1} parent=23 // pred_check_branch
          %235 = sbr.rel (%p233) target = $region28
        $region27: #{tpu_custom_call.1} parent=23 // pred_region
          %s236 = sand.u32 %s46, 1
          %s237 = scalar_lea.sflag [#allocation3], %s236
          %s238 = sand.u32 %s46, 1
          %s239 = smul.addr %s238, 8
          %s240 = scalar_lea.vmem [#allocation2], %s239
          %242 = vsyncadd %s237, 0
          %s243 = sadd.s32 %s30, %s29
          %s244 = smul.addr %s243, 8
          %s245 = scalar_lea.hbm %s0, %s244
          %s247 = sshll.u32 %s245, 4
          %s248 = int_to_ptr.hbm [resolvable:$true] %s247
          %s249 = sshll.u32 %s240, 4
          %s250 = int_to_ptr.vmem [resolvable:$true] %s249
          %252 = dma.hbm_to_vmem [thread:$0]  %s248, 128, %s250, %s237
        $region28: #{tpu_custom_call.1} parent=23 // pred_fallthru
          _
      $region24: #{tpu_custom_call.1} parent=5 // pred_fallthru
        _
      %p253 = scmp.le.s32.totalorder 1, %s22
      %p254 = scmp.lt.s32.totalorder %s22, 3
      %p255 = pnand %p253, %p254
      %p256 = pneg %p255
      // Predicated region
      $region29: #{tpu_custom_call.1} parent=5 // pred_check
        _
      $region30: #{tpu_custom_call.1} parent=5 // pred_check_branch
        %258 = sbr.rel (%p255) target = $region32
      $region31: #{tpu_custom_call.1} parent=5 // pred_region
        %s259 = ssub.s32 %s22, 1
        %s260 = sand.u32 %s49, 1
        %s261 = scalar_lea.sflag [#allocation3], %s260
        %s262 = sand.u32 %s49, 1
        %s263 = smul.addr %s262, 8
        %s264 = scalar_lea.vmem [#allocation2], %s263
        // Predicated region
        $region33: #{tpu_custom_call.1} parent=31 // pred_check
          %p265 = pneg %p62
        $region34: #{tpu_custom_call.1} parent=31 // pred_check_branch
          %267 = sbr.rel (%p265) target = $region36
        $region35: #{tpu_custom_call.1} parent=31 // pred_region
          %269 = dma.done %s261, 128
        $region36: #{tpu_custom_call.1} parent=31 // pred_fallthru
          _
        // Predicated region
        $region37: #{tpu_custom_call.1} parent=31 // pred_check
          %p270 = pneg %p83
        $region38: #{tpu_custom_call.1} parent=31 // pred_check_branch
          %272 = sbr.rel (%p270) target = $region40
        $region39: #{tpu_custom_call.1} parent=31 // pred_region
          %274 = dma.done [#allocation6], 6144
        $region40: #{tpu_custom_call.1} parent=31 // pred_fallthru
          _
        // Predicated region
        $region41: #{tpu_custom_call.1} parent=31 // pred_check
          %p275 = pneg %p104
        $region42: #{tpu_custom_call.1} parent=31 // pred_check_branch
          %277 = sbr.rel (%p275) target = $region44
        $region43: #{tpu_custom_call.1} parent=31 // pred_region
          %279 = dma.done [#allocation6], 192
        $region44: #{tpu_custom_call.1} parent=31 // pred_fallthru
          _
        %s280 = sand.u32 %s49, 1
        %s281 = scalar_lea.sflag [#allocation3], %s280
        %s282 = sand.u32 %s49, 1
        %s283 = smul.addr %s282, 8
        %s284 = scalar_lea.vmem [#allocation2], %s283
        %p285 = pneg %p62
        %p286 = pneg %p59
        %p287 = pneg %p83
        %p288 = pneg %p80
        %p289 = pneg %p104
        %p290 = pneg %p101
        %p291 = pneg %p132
        %p292 = pneg %p129
        %s293 = sand.u32 %s119, 1
        %s294 = scalar_lea.sflag [#allocation4], %s293
        %s295 = sand.u32 %s119, 1
        %s296 = smul.addr %s295, 32
        %s297 = scalar_lea.vmem [#allocation8], %s296
        %p298 = pneg %p160
        %p299 = pneg %p157
        %s300 = sand.u32 %s27, 1
        %s301 = scalar_lea.sflag [#allocation10], %s300
        %s302 = sand.u32 %s147, 1
        %s303 = smul.addr %s302, 32
        %s304 = scalar_lea.vmem [#allocation9], %s303
        %p305 = pneg %p188
        %p306 = pneg %p185
        %s307 = sand.u32 %s27, 1
        %s308 = scalar_lea.sflag [#allocation10], %s307
        %s309 = sand.u32 %s175, 1
        %s310 = smul.addr %s309, 32
        %s311 = scalar_lea.vmem [#allocation11], %s310
        %v312 = vld [vmem:[%s264] sm:$0xff]
        %v313 = vld [vmem:[#allocation5] sm:$0xff]
        %v314 = vld [vmem:[#allocation5 + $0x8] sm:$0xff]
        %v315 = vld [vmem:[#allocation5 + $0x10] sm:$0xff]
        %v316 = vld [vmem:[#allocation5 + $0x18] sm:$0xff]
        %v317 = vld [vmem:[#allocation5 + $0x20] sm:$0xff]
        %v318 = vld [vmem:[#allocation5 + $0x28] sm:$0xff]
        %v319 = vld [vmem:[#allocation5 + $0x30] sm:$0xff]
        %v320 = vld [vmem:[#allocation5 + $0x38] sm:$0xff]
        %v321 = vld [vmem:[#allocation5 + $0x40] sm:$0xff]
        %v322 = vld [vmem:[#allocation5 + $0x48] sm:$0xff]
        %v323 = vld [vmem:[#allocation5 + $0x50] sm:$0xff]
        %v324 = vld [vmem:[#allocation5 + $0x58] sm:$0xff]
        %v325 = vld [vmem:[#allocation5 + $0x60] sm:$0xff]
        %v326 = vld [vmem:[#allocation5 + $0x68] sm:$0xff]
        %v327 = vld [vmem:[#allocation5 + $0x70] sm:$0xff]
        %v328 = vld [vmem:[#allocation5 + $0x78] sm:$0xff]
        %v329 = vld [vmem:[#allocation5 + $0x80] sm:$0xff]
        %v330 = vld [vmem:[#allocation5 + $0x88] sm:$0xff]
        %v331 = vld [vmem:[#allocation5 + $0x90] sm:$0xff]
        %v332 = vld [vmem:[#allocation5 + $0x98] sm:$0xff]
        %v333 = vld [vmem:[#allocation5 + $0xa0] sm:$0xff]
        %v334 = vld [vmem:[#allocation5 + $0xa8] sm:$0xff]
        %v335 = vld [vmem:[#allocation5 + $0xb0] sm:$0xff]
        %v336 = vld [vmem:[#allocation5 + $0xb8] sm:$0xff]
        %v337 = vld [vmem:[#allocation5 + $0xc0] sm:$0xff]
        %v338 = vld [vmem:[#allocation5 + $0xc8] sm:$0xff]
        %v339 = vld [vmem:[#allocation5 + $0xd0] sm:$0xff]
        %v340 = vld [vmem:[#allocation5 + $0xd8] sm:$0xff]
        %v341 = vld [vmem:[#allocation5 + $0xe0] sm:$0xff]
        %v342 = vld [vmem:[#allocation5 + $0xe8] sm:$0xff]
        %v343 = vld [vmem:[#allocation5 + $0xf0] sm:$0xff]
        %v344 = vld [vmem:[#allocation5 + $0xf8] sm:$0xff]
        %v345 = vld [vmem:[#allocation5 + $0x100] sm:$0xff]
        %v346 = vld [vmem:[#allocation5 + $0x108] sm:$0xff]
        %v347 = vld [vmem:[#allocation5 + $0x110] sm:$0xff]
        %v348 = vld [vmem:[#allocation5 + $0x118] sm:$0xff]
        %v349 = vld [vmem:[#allocation5 + $0x120] sm:$0xff]
        %v350 = vld [vmem:[#allocation5 + $0x128] sm:$0xff]
        %v351 = vld [vmem:[#allocation5 + $0x130] sm:$0xff]
        %v352 = vld [vmem:[#allocation5 + $0x138] sm:$0xff]
        %v353 = vld [vmem:[#allocation5 + $0x140] sm:$0xff]
        %v354 = vld [vmem:[#allocation5 + $0x148] sm:$0xff]
        %v355 = vld [vmem:[#allocation5 + $0x150] sm:$0xff]
        %v356 = vld [vmem:[#allocation5 + $0x158] sm:$0xff]
        %v357 = vld [vmem:[#allocation5 + $0x160] sm:$0xff]
        %v358 = vld [vmem:[#allocation5 + $0x168] sm:$0xff]
        %v359 = vld [vmem:[#allocation5 + $0x170] sm:$0xff]
        %v360 = vld [vmem:[#allocation5 + $0x178] sm:$0xff]
        %v361 = vld [vmem:[#allocation7] sm:$0xff]
        %v362 = vld [vmem:[#allocation7 + $0x8] sm:$0xf]
        %v365 = vperm.slane %v361, 0
        %v366 = vperm.slane %v361, 1
        %v367 = vperm.slane %v361, 2
        %v368 = vperm.slane %v361, 3
        %v369 = vperm.slane %v361, 4
        %v370 = vperm.slane %v361, 5
        %v371 = vperm.slane %v361, 6
        %v372 = vperm.slane %v361, 7
        %v373 = vperm.slane %v362, 0
        %v374 = vperm.slane %v362, 1
        %v375 = vperm.slane %v362, 2
        %v376 = vperm.slane %v362, 3
        %vm389 = vcmask 261120
        %v391 = vsel %vm389, %v312, 0
        %393 = vmatpush.msra.mxu0 0.0
        %394 = vmatpush.msra.mxu0 0.0
        %395 = vmatpush.msra.mxu0 0.0
        %396 = vmatpush.msra.mxu0 0.0
        %397 = vmatpush.msra.mxu0 0.0
        %398 = vmatpush.msra.mxu0 0.0
        %399 = vmatpush.msra.mxu0 0.0
        %400 = vmatpush.msra.mxu0 0.0
        %401 = vmatpush.msra.mxu0 0.0
        %402 = vmatpush.msra.mxu0 0.0
        %403 = vmatpush.msra.mxu0 0.0
        %404 = vmatpush.msra.mxu0 0.0
        %405 = vmatpush.msra.mxu0 %v349
        %406 = vmatpush.msra.mxu0 %v337
        %407 = vmatpush.msra.mxu0 %v325
        %408 = vmatpush.msra.mxu0 %v313
        %409 = vmatmul.f32.gmra.mxu0 %v391
        %v410 = vpop.f32.mrf.mxu0
        %v411 = vadd.f32 %v365, %v410
        %412 = vdwg.mxu0
        %413 = vmatpush.msra.mxu0 0.0
        %414 = vmatpush.msra.mxu0 0.0
        %415 = vmatpush.msra.mxu0 0.0
        %416 = vmatpush.msra.mxu0 0.0
        %417 = vmatpush.msra.mxu0 0.0
        %418 = vmatpush.msra.mxu0 0.0
        %419 = vmatpush.msra.mxu0 0.0
        %420 = vmatpush.msra.mxu0 0.0
        %421 = vmatpush.msra.mxu0 0.0
        %422 = vmatpush.msra.mxu0 0.0
        %423 = vmatpush.msra.mxu0 0.0
        %424 = vmatpush.msra.mxu0 0.0
        %425 = vmatpush.msra.mxu0 %v350
        %426 = vmatpush.msra.mxu0 %v338
        %427 = vmatpush.msra.mxu0 %v326
        %428 = vmatpush.msra.mxu0 %v314
        %429 = vmatmul.f32.gmra.mxu0 %v391
        %v430 = vpop.f32.mrf.mxu0
        %v431 = vadd.f32 %v366, %v430
        %432 = vdwg.mxu0
        %433 = vmatpush.msra.mxu0 0.0
        %434 = vmatpush.msra.mxu0 0.0
        %435 = vmatpush.msra.mxu0 0.0
        %436 = vmatpush.msra.mxu0 0.0
        %437 = vmatpush.msra.mxu0 0.0
        %438 = vmatpush.msra.mxu0 0.0
        %439 = vmatpush.msra.mxu0 0.0
        %440 = vmatpush.msra.mxu0 0.0
        %441 = vmatpush.msra.mxu0 0.0
        %442 = vmatpush.msra.mxu0 0.0
        %443 = vmatpush.msra.mxu0 0.0
        %444 = vmatpush.msra.mxu0 0.0
        %445 = vmatpush.msra.mxu0 %v351
        %446 = vmatpush.msra.mxu0 %v339
        %447 = vmatpush.msra.mxu0 %v327
        %448 = vmatpush.msra.mxu0 %v315
        %449 = vmatmul.f32.gmra.mxu0 %v391
        %v450 = vpop.f32.mrf.mxu0
        %v451 = vadd.f32 %v367, %v450
        %452 = vdwg.mxu0
        %453 = vmatpush.msra.mxu0 0.0
        %454 = vmatpush.msra.mxu0 0.0
        %455 = vmatpush.msra.mxu0 0.0
        %456 = vmatpush.msra.mxu0 0.0
        %457 = vmatpush.msra.mxu0 0.0
        %458 = vmatpush.msra.mxu0 0.0
        %459 = vmatpush.msra.mxu0 0.0
        %460 = vmatpush.msra.mxu0 0.0
        %461 = vmatpush.msra.mxu0 0.0
        %462 = vmatpush.msra.mxu0 0.0
        %463 = vmatpush.msra.mxu0 0.0
        %464 = vmatpush.msra.mxu0 0.0
        %465 = vmatpush.msra.mxu0 %v352
        %466 = vmatpush.msra.mxu0 %v340
        %467 = vmatpush.msra.mxu0 %v328
        %468 = vmatpush.msra.mxu0 %v316
        %469 = vmatmul.f32.gmra.mxu0 %v391
        %v470 = vpop.f32.mrf.mxu0
        %v471 = vadd.f32 %v368, %v470
        %472 = vdwg.mxu0
        %473 = vmatpush.msra.mxu0 0.0
        %474 = vmatpush.msra.mxu0 0.0
        %475 = vmatpush.msra.mxu0 0.0
        %476 = vmatpush.msra.mxu0 0.0
        %477 = vmatpush.msra.mxu0 0.0
        %478 = vmatpush.msra.mxu0 0.0
        %479 = vmatpush.msra.mxu0 0.0
        %480 = vmatpush.msra.mxu0 0.0
        %481 = vmatpush.msra.mxu0 0.0
        %482 = vmatpush.msra.mxu0 0.0
        %483 = vmatpush.msra.mxu0 0.0
        %484 = vmatpush.msra.mxu0 0.0
        %485 = vmatpush.msra.mxu0 %v353
        %486 = vmatpush.msra.mxu0 %v341
        %487 = vmatpush.msra.mxu0 %v329
        %488 = vmatpush.msra.mxu0 %v317
        %489 = vmatmul.f32.gmra.mxu0 %v391
        %v490 = vpop.f32.mrf.mxu0
        %v491 = vadd.f32 %v369, %v490
        %492 = vdwg.mxu0
        %493 = vmatpush.msra.mxu0 0.0
        %494 = vmatpush.msra.mxu0 0.0
        %495 = vmatpush.msra.mxu0 0.0
        %496 = vmatpush.msra.mxu0 0.0
        %497 = vmatpush.msra.mxu0 0.0
        %498 = vmatpush.msra.mxu0 0.0
        %499 = vmatpush.msra.mxu0 0.0
        %500 = vmatpush.msra.mxu0 0.0
        %501 = vmatpush.msra.mxu0 0.0
        %502 = vmatpush.msra.mxu0 0.0
        %503 = vmatpush.msra.mxu0 0.0
        %504 = vmatpush.msra.mxu0 0.0
        %505 = vmatpush.msra.mxu0 %v354
        %506 = vmatpush.msra.mxu0 %v342
        %507 = vmatpush.msra.mxu0 %v330
        %508 = vmatpush.msra.mxu0 %v318
        %509 = vmatmul.f32.gmra.mxu0 %v391
        %v510 = vpop.f32.mrf.mxu0
        %v511 = vadd.f32 %v370, %v510
        %512 = vdwg.mxu0
        %513 = vmatpush.msra.mxu0 0.0
        %514 = vmatpush.msra.mxu0 0.0
        %515 = vmatpush.msra.mxu0 0.0
        %516 = vmatpush.msra.mxu0 0.0
        %517 = vmatpush.msra.mxu0 0.0
        %518 = vmatpush.msra.mxu0 0.0
        %519 = vmatpush.msra.mxu0 0.0
        %520 = vmatpush.msra.mxu0 0.0
        %521 = vmatpush.msra.mxu0 0.0
        %522 = vmatpush.msra.mxu0 0.0
        %523 = vmatpush.msra.mxu0 0.0
        %524 = vmatpush.msra.mxu0 0.0
        %525 = vmatpush.msra.mxu0 %v355
        %526 = vmatpush.msra.mxu0 %v343
        %527 = vmatpush.msra.mxu0 %v331
        %528 = vmatpush.msra.mxu0 %v319
        %529 = vmatmul.f32.gmra.mxu0 %v391
        %v530 = vpop.f32.mrf.mxu0
        %v531 = vadd.f32 %v371, %v530
        %532 = vdwg.mxu0
        %533 = vmatpush.msra.mxu0 0.0
        %534 = vmatpush.msra.mxu0 0.0
        %535 = vmatpush.msra.mxu0 0.0
        %536 = vmatpush.msra.mxu0 0.0
        %537 = vmatpush.msra.mxu0 0.0
        %538 = vmatpush.msra.mxu0 0.0
        %539 = vmatpush.msra.mxu0 0.0
        %540 = vmatpush.msra.mxu0 0.0
        %541 = vmatpush.msra.mxu0 0.0
        %542 = vmatpush.msra.mxu0 0.0
        %543 = vmatpush.msra.mxu0 0.0
        %544 = vmatpush.msra.mxu0 0.0
        %545 = vmatpush.msra.mxu0 %v356
        %546 = vmatpush.msra.mxu0 %v344
        %547 = vmatpush.msra.mxu0 %v332
        %548 = vmatpush.msra.mxu0 %v320
        %549 = vmatmul.f32.gmra.mxu0 %v391
        %v550 = vpop.f32.mrf.mxu0
        %v551 = vadd.f32 %v372, %v550
        %552 = vdwg.mxu0
        %553 = vmatpush.msra.mxu0 0.0
        %554 = vmatpush.msra.mxu0 0.0
        %555 = vmatpush.msra.mxu0 0.0
        %556 = vmatpush.msra.mxu0 0.0
        %557 = vmatpush.msra.mxu0 0.0
        %558 = vmatpush.msra.mxu0 0.0
        %559 = vmatpush.msra.mxu0 0.0
        %560 = vmatpush.msra.mxu0 0.0
        %561 = vmatpush.msra.mxu0 0.0
        %562 = vmatpush.msra.mxu0 0.0
        %563 = vmatpush.msra.mxu0 0.0
        %564 = vmatpush.msra.mxu0 0.0
        %565 = vmatpush.msra.mxu0 %v357
        %566 = vmatpush.msra.mxu0 %v345
        %567 = vmatpush.msra.mxu0 %v333
        %568 = vmatpush.msra.mxu0 %v321
        %569 = vmatmul.f32.gmra.mxu0 %v391
        %v570 = vpop.f32.mrf.mxu0
        %v571 = vadd.f32 %v373, %v570
        %572 = vdwg.mxu0
        %573 = vmatpush.msra.mxu0 0.0
        %574 = vmatpush.msra.mxu0 0.0
        %575 = vmatpush.msra.mxu0 0.0
        %576 = vmatpush.msra.mxu0 0.0
        %577 = vmatpush.msra.mxu0 0.0
        %578 = vmatpush.msra.mxu0 0.0
        %579 = vmatpush.msra.mxu0 0.0
        %580 = vmatpush.msra.mxu0 0.0
        %581 = vmatpush.msra.mxu0 0.0
        %582 = vmatpush.msra.mxu0 0.0
        %583 = vmatpush.msra.mxu0 0.0
        %584 = vmatpush.msra.mxu0 0.0
        %585 = vmatpush.msra.mxu0 %v358
        %586 = vmatpush.msra.mxu0 %v346
        %587 = vmatpush.msra.mxu0 %v334
        %588 = vmatpush.msra.mxu0 %v322
        %589 = vmatmul.f32.gmra.mxu0 %v391
        %v590 = vpop.f32.mrf.mxu0
        %v591 = vadd.f32 %v374, %v590
        %592 = vdwg.mxu0
        %593 = vmatpush.msra.mxu0 0.0
        %594 = vmatpush.msra.mxu0 0.0
        %595 = vmatpush.msra.mxu0 0.0
        %596 = vmatpush.msra.mxu0 0.0
        %597 = vmatpush.msra.mxu0 0.0
        %598 = vmatpush.msra.mxu0 0.0
        %599 = vmatpush.msra.mxu0 0.0
        %600 = vmatpush.msra.mxu0 0.0
        %601 = vmatpush.msra.mxu0 0.0
        %602 = vmatpush.msra.mxu0 0.0
        %603 = vmatpush.msra.mxu0 0.0
        %604 = vmatpush.msra.mxu0 0.0
        %605 = vmatpush.msra.mxu0 %v359
        %606 = vmatpush.msra.mxu0 %v347
        %607 = vmatpush.msra.mxu0 %v335
        %608 = vmatpush.msra.mxu0 %v323
        %609 = vmatmul.f32.gmra.mxu0 %v391
        %v610 = vpop.f32.mrf.mxu0
        %v611 = vadd.f32 %v375, %v610
        %612 = vdwg.mxu0
        %613 = vmatpush.msra.mxu0 0.0
        %614 = vmatpush.msra.mxu0 0.0
        %615 = vmatpush.msra.mxu0 0.0
        %616 = vmatpush.msra.mxu0 0.0
        %617 = vmatpush.msra.mxu0 0.0
        %618 = vmatpush.msra.mxu0 0.0
        %619 = vmatpush.msra.mxu0 0.0
        %620 = vmatpush.msra.mxu0 0.0
        %621 = vmatpush.msra.mxu0 0.0
        %622 = vmatpush.msra.mxu0 0.0
        %623 = vmatpush.msra.mxu0 0.0
        %624 = vmatpush.msra.mxu0 0.0
        %625 = vmatpush.msra.mxu0 %v360
        %626 = vmatpush.msra.mxu0 %v348
        %627 = vmatpush.msra.mxu0 %v336
        %628 = vmatpush.msra.mxu0 %v324
        %629 = vmatmul.f32.gmra.mxu0 %v391
        %v630 = vpop.f32.mrf.mxu0
        %v631 = vadd.f32 %v376, %v630
        %632 = vdwg.mxu0
        %633 = vst [vmem:[%s297] sm:$0xff] %v411
        %634 = vst [vmem:[%s304] sm:$0xff] %v491
        %635 = vst [vmem:[%s311] sm:$0xff] %v571
        %s636 = scalar_lea.vmem %s297, 8 [#allocation8]
        %637 = vst [vmem:[%s636] sm:$0xff] %v431
        %s638 = scalar_lea.vmem %s304, 8 [#allocation9]
        %639 = vst [vmem:[%s638] sm:$0xff] %v511
        %s640 = scalar_lea.vmem %s311, 8 [#allocation11]
        %641 = vst [vmem:[%s640] sm:$0xff] %v591
        %s642 = scalar_lea.vmem %s297, 16 [#allocation8]
        %643 = vst [vmem:[%s642] sm:$0xff] %v451
        %s644 = scalar_lea.vmem %s304, 16 [#allocation9]
        %645 = vst [vmem:[%s644] sm:$0xff] %v531
        %s646 = scalar_lea.vmem %s311, 16 [#allocation11]
        %647 = vst [vmem:[%s646] sm:$0xff] %v611
        %s648 = scalar_lea.vmem %s297, 24 [#allocation8]
        %649 = vst [vmem:[%s648] sm:$0xff] %v471
        %s650 = scalar_lea.vmem %s304, 24 [#allocation9]
        %651 = vst [vmem:[%s650] sm:$0xff] %v551
        %s652 = scalar_lea.vmem %s311, 24 [#allocation11]
        %653 = vst [vmem:[%s652] sm:$0xff] %v631
        %s654 = sand.u32 %s119, 1
        %s655 = scalar_lea.sflag [#allocation4], %s654
        %s656 = sand.u32 %s119, 1
        %s657 = smul.addr %s656, 32
        %s658 = scalar_lea.vmem [#allocation8], %s657
        %s659 = sand.u32 %s27, 1
        %s660 = scalar_lea.sflag [#allocation10], %s659
        %s661 = sand.u32 %s147, 1
        %s662 = smul.addr %s661, 32
        %s663 = scalar_lea.vmem [#allocation9], %s662
        %s664 = sand.u32 %s27, 1
        %s665 = scalar_lea.sflag [#allocation10], %s664
        %s666 = sand.u32 %s175, 1
        %s667 = smul.addr %s666, 32
        %s668 = scalar_lea.vmem [#allocation11], %s667
        // Predicated region
        $region45: #{tpu_custom_call.1} parent=31 // pred_check
          %p669 = pneg %p129
        $region46: #{tpu_custom_call.1} parent=31 // pred_check_branch
          %671 = sbr.rel (%p669) target = $region48
        $region47: #{tpu_custom_call.1} parent=31 // pred_region
          %673 = vsyncadd %s655, 0
          %s674 = smul.addr %s31, 4
          %s675 = sadd.s32 %s32, %s674
          %s676 = smul.addr %s675, 8
          %s677 = scalar_lea.hbm %s3, %s676
          %s678 = sshll.u32 %s658, 4
          %s679 = int_to_ptr.vmem [resolvable:$true] %s678
          %s680 = sshll.u32 %s677, 4
          %s681 = int_to_ptr.hbm [resolvable:$true] %s680
          %686 = dma.vmem_to_hbm [thread:$0]  %s679, 512, %s681, %s655, 128, 128, 8
        $region48: #{tpu_custom_call.1} parent=31 // pred_fallthru
          _
        // Predicated region
        $region49: #{tpu_custom_call.1} parent=31 // pred_check
          %p687 = pneg %p157
        $region50: #{tpu_custom_call.1} parent=31 // pred_check_branch
          %689 = sbr.rel (%p687) target = $region52
        $region51: #{tpu_custom_call.1} parent=31 // pred_region
          %691 = vsyncadd %s660, 0
          %s692 = smul.addr %s31, 4
          %s693 = sadd.s32 %s32, %s692
          %s694 = smul.addr %s693, 8
          %s695 = scalar_lea.hbm %s4, %s694
          %s696 = sshll.u32 %s663, 4
          %s697 = int_to_ptr.vmem [resolvable:$true] %s696
          %s698 = sshll.u32 %s695, 4
          %s699 = int_to_ptr.hbm [resolvable:$true] %s698
          %704 = dma.vmem_to_hbm [thread:$0]  %s697, 512, %s699, %s660, 128, 128, 8
        $region52: #{tpu_custom_call.1} parent=31 // pred_fallthru
          _
        // Predicated region
        $region53: #{tpu_custom_call.1} parent=31 // pred_check
          %p705 = pneg %p185
        $region54: #{tpu_custom_call.1} parent=31 // pred_check_branch
          %707 = sbr.rel (%p705) target = $region56
        $region55: #{tpu_custom_call.1} parent=31 // pred_region
          %709 = vsyncadd %s665, 0
          %s710 = smul.addr %s31, 4
          %s711 = sadd.s32 %s32, %s710
          %s712 = smul.addr %s711, 8
          %s713 = scalar_lea.hbm %s5, %s712
          %s714 = sshll.u32 %s668, 4
          %s715 = int_to_ptr.vmem [resolvable:$true] %s714
          %s716 = sshll.u32 %s713, 4
          %s717 = int_to_ptr.hbm [resolvable:$true] %s716
          %722 = dma.vmem_to_hbm [thread:$0]  %s715, 512, %s717, %s665, 128, 128, 8
        $region56: #{tpu_custom_call.1} parent=31 // pred_fallthru
          _
      $region32: #{tpu_custom_call.1} parent=5 // pred_fallthru
        _
      %p723 = scmp.le.s32.totalorder 2, %s22
      // Predicated region
      $region57: #{tpu_custom_call.1} parent=5 // pred_check
        %p724 = pneg %p723
      $region58: #{tpu_custom_call.1} parent=5 // pred_check_branch
        %726 = sbr.rel (%p724) target = $region60
      $region59: #{tpu_custom_call.1} parent=5 // pred_region
        %s727 = ssub.s32 %s22, 2
        // Predicated region
        $region61: #{tpu_custom_call.1} parent=59 // pred_check
          %p728 = pneg %p135
        $region62: #{tpu_custom_call.1} parent=59 // pred_check_branch
          %730 = sbr.rel (%p728) target = $region64
        $region63: #{tpu_custom_call.1} parent=59 // pred_region
          %s731 = sand.u32 %s120, 1
          %s732 = scalar_lea.sflag [#allocation4], %s731
          %s733 = sand.u32 %s120, 1
          %s734 = smul.addr %s733, 32
          %s735 = scalar_lea.vmem [#allocation8], %s734
          %737 = dma.done %s732, 512
        $region64: #{tpu_custom_call.1} parent=59 // pred_fallthru
          _
        // Predicated region
        $region65: #{tpu_custom_call.1} parent=59 // pred_check
          %p738 = pneg %p163
        $region66: #{tpu_custom_call.1} parent=59 // pred_check_branch
          %740 = sbr.rel (%p738) target = $region68
        $region67: #{tpu_custom_call.1} parent=59 // pred_region
          %s741 = sand.u32 %s28, 1
          %s742 = scalar_lea.sflag [#allocation10], %s741
          %s743 = sand.u32 %s148, 1
          %s744 = smul.addr %s743, 32
          %s745 = scalar_lea.vmem [#allocation9], %s744
          %747 = dma.done %s742, 512
        $region68: #{tpu_custom_call.1} parent=59 // pred_fallthru
          _
        // Predicated region
        $region69: #{tpu_custom_call.1} parent=59 // pred_check
          %p748 = pneg %p191
        $region70: #{tpu_custom_call.1} parent=59 // pred_check_branch
          %750 = sbr.rel (%p748) target = $region72
        $region71: #{tpu_custom_call.1} parent=59 // pred_region
          %s751 = sand.u32 %s28, 1
          %s752 = scalar_lea.sflag [#allocation10], %s751
          %s753 = sand.u32 %s176, 1
          %s754 = smul.addr %s753, 32
          %s755 = scalar_lea.vmem [#allocation11], %s754
          %757 = dma.done %s752, 512
        $region72: #{tpu_custom_call.1} parent=59 // pred_fallthru
          _
      $region60: #{tpu_custom_call.1} parent=5 // pred_fallthru
        _
    $region6: #{tpu_custom_call.1} parent=1 // loop_footer
      %s26 = sadd.s32 1, %s22
    $region7: #{tpu_custom_call.1} parent=1 // loop_footer_branch
      %21 = sbr.rel target = $region3
    $region8: #{tpu_custom_call.1} parent=1 // loop_exit
      _
    %758 = vsyncpa [#allocation3], 1
    %s759 = scalar_lea.sflag [#allocation3], 1
    %760 = vsyncpa %s759, 1
    %761 = vsyncpa [#allocation6], 1
    %762 = vsyncpa [#allocation4], 1
    %s763 = scalar_lea.sflag [#allocation4], 1
    %764 = vsyncpa %s763, 1
    %765 = vsyncpa [#allocation10], 1
    %s766 = scalar_lea.sflag [#allocation10], 1
    %767 = vsyncpa %s766, 1

</llo_original>
